<compile_context>
chip_gen: v6e
topology: v6e:2x2x1
jax: 0.10.0
libtpu: 0.0.40
codegen_flags: <defaults>
</compile_context>

<pallas_src>
import functools

import jax
import jax.numpy as jnp
from jax import lax
from jax.experimental import pallas as pl
from jax.experimental.pallas import tpu as pltpu

EPSILON = 1e-6                            # gtorch_utils.constants.EPSILON stand-in
_LANE = 128
_BLOCK_PAIR_BYTES = 8 * 1024 * 1024       # preds+targets bytes per grid step
_VMEM_LIMIT_BYTES = 32 * 1024 * 1024      # <= physical VMEM on v5e/v6e/v7x


def _round_up(x, m):
    return (x + m - 1) // m * m


def _rnpv_partial_kernel(k_steps, tile_r, r_valid, needs_mask,
                         preds_ref, targets_ref, out_ref):
    """Accumulate per-sample [sum(p*t), sum(p), sum(t)] into lane-wide partials.

    preds_ref / targets_ref : (B, tile_r, 128) input tiles (original dtype).
    out_ref                 : (1, 3, B, 128) f32, resident across the k axis.
    """
    s = pl.program_id(0)      # parallel split (one per TensorCore on v7x)
    k = pl.program_id(1)      # streaming reduction over row-blocks

    @pl.when(k == 0)
    def _init():
        out_ref[...] = jnp.zeros_like(out_ref)

    p = preds_ref[...].astype(jnp.float32)
    t = targets_ref[...].astype(jnp.float32)

    def _accumulate(pv, tv):
        # Lane-wide partial sums: the axis-1 (sublane) reduction is mostly plain
        # vreg adds on the VPU; the 128->1 lane reduction happens once, in the
        # JAX epilogue, not per tile.
        out_ref[0, 0, :, :] += jnp.sum(pv * tv, axis=1)   # s_pt
        out_ref[0, 1, :, :] += jnp.sum(pv, axis=1)        # s_p
        out_ref[0, 2, :, :] += jnp.sum(tv, axis=1)        # s_t

    if needs_mask:
        g = s * k_steps + k                         # global row-block index
        fully_valid = (g + 1) * tile_r <= r_valid   # block entirely in-bounds?

        @pl.when(fully_valid)
        def _steady():
            _accumulate(p, t)

        @pl.when(jnp.logical_not(fully_valid))
        def _tail():
            row = g * tile_r + lax.broadcasted_iota(jnp.int32, p.shape, 1)
            valid = row < r_valid
            _accumulate(jnp.where(valid, p, 0.0), jnp.where(valid, t, 0.0))
    else:
        _accumulate(p, t)


def rnpv(preds, targets, xi: float = 1.0, tau: float = 1.0,
         tile_r: int | None = None, n_split: int = 2):
    """Pallas TPU implementation of the RNPV score (returns a float32 scalar).

    Pass preds/targets in the narrowest dtype available (bool/int8/bf16/f32):
    the kernel streams the original dtype from HBM and casts per tile to f32.
    """
    assert preds.shape == targets.shape, (preds.shape, targets.shape)
    assert xi > 0 and tau > 0

    b = int(preds.shape[0])
    n_true = 1
    for d in preds.shape[1:]:
        n_true *= int(d)

    p2 = preds.reshape(b, n_true)
    t2 = targets.reshape(b, n_true)

    # Lane-dense layout: (B, R, 128).  Pad the feature axis to a multiple of 128
    # with zeros (neutral for all three sums; TN uses the true N in the epilogue).
    r = pl.cdiv(n_true, _LANE)
    n_pad = r * _LANE
    if n_pad != n_true:
        p2 = jnp.pad(p2, ((0, 0), (0, n_pad - n_true)))
        t2 = jnp.pad(t2, ((0, 0), (0, n_pad - n_true)))
    p3 = p2.reshape(b, r, _LANE)
    t3 = t2.reshape(b, r, _LANE)

    # --- tile sizing (sublane-dense, padding- and double-buffer-aware) -----------
    if tile_r is None:
        itemsize_sum = (jnp.dtype(p3.dtype).itemsize
                        + jnp.dtype(t3.dtype).itemsize)
        bytes_per_row = b * _LANE * itemsize_sum
        vmem_rows = max(32, (_BLOCK_PAIR_BYTES // bytes_per_row) // 32 * 32)
        split_rows = _round_up(pl.cdiv(r, max(int(n_split), 1)), 32)
        tile_r = min(vmem_rows, split_rows, _round_up(r, 32))
        if tile_r >= r:
            tile_r = r                        # one block covers the whole row axis
    else:
        tile_r = int(tile_r)
        assert tile_r == r or tile_r % 8 == 0, tile_r

    nblocks = pl.cdiv(r, tile_r)
    n_split = max(1, min(int(n_split), nblocks))
    k_steps = pl.cdiv(nblocks, n_split)
    total_iters = n_split * k_steps
    needs_mask = (nblocks * tile_r != r) or (total_iters != nblocks)

    if total_iters > nblocks:
        # Some (s, k) pairs fall past the last block: clamp the fetch (never issue
        # a fully out-of-bounds DMA) and let the in-kernel row mask zero them out.
        def _row_block(s, k):
            return jnp.minimum(s * k_steps + k, nblocks - 1)
    else:
        def _row_block(s, k):
            return s * k_steps + k

    def _in_index(s, k):
        return (0, _row_block(s, k), 0)

    # TODO(synk): on v6e (128 MiB VMEM) sweep pipeline_mode=pl.Buffered(3) on the
    # input specs if traces show DMA gaps at step boundaries; default 2x buffering
    # is kept here for portability.
    in_specs = [pl.BlockSpec((b, tile_r, _LANE), _in_index),
                pl.BlockSpec((b, tile_r, _LANE), _in_index)]

    kernel = functools.partial(
        _rnpv_partial_kernel, int(k_steps), int(tile_r), int(r), bool(needs_mask))

    partials = pl.pallas_call(
        kernel,
        out_shape=jax.ShapeDtypeStruct((n_split, 3, b, _LANE), jnp.float32),
        grid=(n_split, k_steps),
        in_specs=in_specs,
        out_specs=pl.BlockSpec((1, 3, b, _LANE), lambda s, k: (s, 0, 0, 0)),
        compiler_params=pltpu.CompilerParams(
            dimension_semantics=("parallel", "arbitrary"),
            vmem_limit_bytes=_VMEM_LIMIT_BYTES),
    )(p3, t3)

    # O(B) epilogue in plain JAX: combine per-split lane-wide partials and apply
    # the RNPV formula (negligible next to the O(B*N) streaming reduction above).
    sums = jnp.sum(partials, axis=(0, 3))          # (3, B) float32
    s_pt, s_p, s_t = sums[0], sums[1], sums[2]
    tp = s_pt
    fn = s_t - s_pt
    tn = jnp.float32(n_true) - s_p - s_t + s_pt    # uses the true (unpadded) N
    recall = jnp.mean(tp / (tp + fn + EPSILON))
    npv = jnp.mean(tn / (tn + fn + EPSILON))
    return (xi * recall + tau * npv) / (xi + tau)


def _rnpv_ref(preds, targets, xi=1.0, tau=1.0):
    """Pure-JAX reference of the same semantics (correctness check)."""
    b = preds.shape[0]
    p = preds.reshape(b, -1).astype(jnp.float32)
    t = targets.reshape(b, -1).astype(jnp.float32)
    tp = jnp.sum(p * t, axis=1)
    fn = jnp.sum((1.0 - p) * t, axis=1)
    tn = jnp.sum((1.0 - p) * (1.0 - t), axis=1)
    recall = jnp.mean(tp / (tp + fn + EPSILON))
    npv = jnp.mean(tn / (tn + fn + EPSILON))
    return (xi * recall + tau * npv) / (xi + tau)


if __name__ == "__main__":
    key = jax.random.PRNGKey(0)
    k1, k2, k3, k4 = jax.random.split(key, 4)

    # 1) Small NCHW binary masks, f32, auto tiling (N=1024 -> R=8, single block).
    preds = (jax.random.uniform(k1, (2, 4, 16, 16)) > 0.5).astype(jnp.float32)
    targets = (jax.random.uniform(k2, (2, 4, 16, 16)) > 0.5).astype(jnp.float32)
    score = jax.block_until_ready(rnpv(preds, targets, xi=1.0, tau=1.0))
    ref = jax.block_until_ready(_rnpv_ref(preds, targets, xi=1.0, tau=1.0))
    assert jnp.allclose(score, ref, atol=1e-5, rtol=1e-5), (score, ref)

    # 2) bf16 inputs + forced small tile -> exact 2-way split, multi-block path
    #    (N=2048 -> R=16, tile_r=8, grid=(2,1), no masking).
    p_b = (jax.random.uniform(k3, (2, 8, 16, 16)) > 0.5)
    t_b = (jax.random.uniform(k4, (2, 8, 16, 16)) > 0.5)
    score2 = jax.block_until_ready(
        rnpv(p_b.astype(jnp.bfloat16), t_b.astype(jnp.bfloat16),
             xi=2.0, tau=0.5, tile_r=8, n_split=2))
    ref2 = jax.block_until_ready(
        _rnpv_ref(p_b.astype(jnp.float32), t_b.astype(jnp.float32), xi=2.0, tau=0.5))
    assert jnp.allclose(score2, ref2, atol=1e-5, rtol=1e-5), (score2, ref2)

    # 3) R not divisible by tile_r with an uneven split -> masked partial tail block
    #    plus a clamped fully-out-of-bounds iteration (N=5120 -> R=40, tile_r=16,
    #    3 blocks over 2 splits -> 4 grid iterations).
    p_m = (jax.random.uniform(k1, (2, 5, 8, 128)) > 0.5).astype(jnp.float32)
    t_m = (jax.random.uniform(k2, (2, 5, 8, 128)) > 0.5).astype(jnp.float32)
    score3 = jax.block_until_ready(rnpv(p_m, t_m, tile_r=16, n_split=2))
    ref3 = jax.block_until_ready(_rnpv_ref(p_m, t_m))
    assert jnp.allclose(score3, ref3, atol=1e-5, rtol=1e-5), (score3, ref3)

    # 4) N not divisible by 128 -> zero-padded lane tail path (N=1250 -> R=10).
    p_p = (jax.random.uniform(k3, (2, 5, 10, 25)) > 0.5).astype(jnp.float32)
    t_p = (jax.random.uniform(k4, (2, 5, 10, 25)) > 0.5).astype(jnp.float32)
    score4 = jax.block_until_ready(rnpv(p_p, t_p, xi=1.5, tau=0.75))
    ref4 = jax.block_until_ready(_rnpv_ref(p_p, t_p, xi=1.5, tau=0.75))
    assert jnp.allclose(score4, ref4, atol=1e-5, rtol=1e-5), (score4, ref4)

    print("KERNEL_OK")
</pallas_src>

<mosaic_0001>
module attributes {stable_mosaic.version = 11 : i64} {
  func.func @_rnpv_partial_kernel(%arg0: i32, %arg1: i32, %arg2: memref<2x8x128xf32, #tpu.memory_space<vmem>>, %arg3: memref<2x8x128xf32, #tpu.memory_space<vmem>>, %arg4: memref<1x3x2x128xf32, #tpu.memory_space<vmem>>) attributes {dimension_semantics = [#tpu.dimension_semantics<parallel>, #tpu.dimension_semantics<arbitrary>], iteration_bounds = array<i64: 1, 1>, scalar_prefetch = 0 : i64, scratch_operands = 0 : i64, tpu.core_type = #tpu.core_type<tc>, window_params = [{transform_indices = @transform_0, window_bounds = array<i64: 2, 8, 128>}, {transform_indices = @transform_1, window_bounds = array<i64: 2, 8, 128>}, {transform_indices = @transform_2, window_bounds = array<i64: 1, 3, 2, 128>}]} {
    %c0_i32 = arith.constant 0 : i32
    %0 = arith.cmpi eq, %arg1, %c0_i32 : i32
    %1 = arith.extui %0 : i1 to i32
    %c0_i32_0 = arith.constant 0 : i32
    %2 = arith.cmpi ne, %1, %c0_i32_0 : i32
    scf.if %2 {
      %cst_30 = arith.constant 0.000000e+00 : f32
      %27 = vector.broadcast %cst_30 : f32 to vector<1x3x2x128xf32>
      %c0_31 = arith.constant 0 : index
      %c0_32 = arith.constant 0 : index
      %c0_33 = arith.constant 0 : index
      %c0_34 = arith.constant 0 : index
      %28 = vector.load %arg4[%c0_31, %c0_32, %c0_33, %c0_34] : memref<1x3x2x128xf32, #tpu.memory_space<vmem>>, vector<1x3x2x128xf32>
      tpu.vector_store %arg4[%c0_31, %c0_32, %c0_33, %c0_34], %27 {strides = array<i32>} : memref<1x3x2x128xf32, #tpu.memory_space<vmem>>, vector<1x3x2x128xf32>,
    } else {
    }
    %c0 = arith.constant 0 : index
    %c0_1 = arith.constant 0 : index
    %c0_2 = arith.constant 0 : index
    %3 = vector.load %arg2[%c0, %c0_1, %c0_2] : memref<2x8x128xf32, #tpu.memory_space<vmem>>, vector<2x8x128xf32>
    %c0_3 = arith.constant 0 : index
    %c0_4 = arith.constant 0 : index
    %c0_5 = arith.constant 0 : index
    %4 = vector.load %arg3[%c0_3, %c0_4, %c0_5] : memref<2x8x128xf32, #tpu.memory_space<vmem>>, vector<2x8x128xf32>
    %c0_6 = arith.constant 0 : index
    %c0_7 = arith.constant 0 : index
    %c0_8 = arith.constant 0 : index
    %c0_9 = arith.constant 0 : index
    %5 = vector.load %arg4[%c0_6, %c0_7, %c0_8, %c0_9] : memref<1x3x2x128xf32, #tpu.memory_space<vmem>>, vector<1x1x2x128xf32>
    %6 = vector.shape_cast %5 : vector<1x1x2x128xf32> to vector<2x128xf32>
    %7 = arith.mulf %3, %4 : vector<2x8x128xf32>
    %cst = arith.constant dense<0.000000e+00> : vector<2x128xf32>
    %8 = vector.multi_reduction <add>, %7, %cst [1] : vector<2x8x128xf32> to vector<2x128xf32>
    %9 = arith.addf %6, %8 : vector<2x128xf32>
    %c0_10 = arith.constant 0 : index
    %c0_11 = arith.constant 0 : index
    %c0_12 = arith.constant 0 : index
    %c0_13 = arith.constant 0 : index
    %10 = vector.load %arg4[%c0_10, %c0_11, %c0_12, %c0_13] : memref<1x3x2x128xf32, #tpu.memory_space<vmem>>, vector<1x1x2x128xf32>
    %11 = vector.shape_cast %10 : vector<1x1x2x128xf32> to vector<2x128xf32>
    %12 = vector.shape_cast %9 : vector<2x128xf32> to vector<1x1x2x128xf32>
    tpu.vector_store %arg4[%c0_10, %c0_11, %c0_12, %c0_13], %12 {strides = array<i32>} : memref<1x3x2x128xf32, #tpu.memory_space<vmem>>, vector<1x1x2x128xf32>,
    %c0_14 = arith.constant 0 : index
    %c1 = arith.constant 1 : index
    %c0_15 = arith.constant 0 : index
    %c0_16 = arith.constant 0 : index
    %13 = vector.load %arg4[%c0_14, %c1, %c0_15, %c0_16] : memref<1x3x2x128xf32, #tpu.memory_space<vmem>>, vector<1x1x2x128xf32>
    %14 = vector.shape_cast %13 : vector<1x1x2x128xf32> to vector<2x128xf32>
    %cst_17 = arith.constant dense<0.000000e+00> : vector<2x128xf32>
    %15 = vector.multi_reduction <add>, %3, %cst_17 [1] : vector<2x8x128xf32> to vector<2x128xf32>
    %16 = arith.addf %14, %15 : vector<2x128xf32>
    %c0_18 = arith.constant 0 : index
    %c1_19 = arith.constant 1 : index
    %c0_20 = arith.constant 0 : index
    %c0_21 = arith.constant 0 : index
    %17 = vector.load %arg4[%c0_18, %c1_19, %c0_20, %c0_21] : memref<1x3x2x128xf32, #tpu.memory_space<vmem>>, vector<1x1x2x128xf32>
    %18 = vector.shape_cast %17 : vector<1x1x2x128xf32> to vector<2x128xf32>
    %19 = vector.shape_cast %16 : vector<2x128xf32> to vector<1x1x2x128xf32>
    tpu.vector_store %arg4[%c0_18, %c1_19, %c0_20, %c0_21], %19 {strides = array<i32>} : memref<1x3x2x128xf32, #tpu.memory_space<vmem>>, vector<1x1x2x128xf32>,
    %c0_22 = arith.constant 0 : index
    %c2 = arith.constant 2 : index
    %c0_23 = arith.constant 0 : index
    %c0_24 = arith.constant 0 : index
    %20 = vector.load %arg4[%c0_22, %c2, %c0_23, %c0_24] : memref<1x3x2x128xf32, #tpu.memory_space<vmem>>, vector<1x1x2x128xf32>
    %21 = vector.shape_cast %20 : vector<1x1x2x128xf32> to vector<2x128xf32>
    %cst_25 = arith.constant dense<0.000000e+00> : vector<2x128xf32>
    %22 = vector.multi_reduction <add>, %4, %cst_25 [1] : vector<2x8x128xf32> to vector<2x128xf32>
    %23 = arith.addf %21, %22 : vector<2x128xf32>
    %c0_26 = arith.constant 0 : index
    %c2_27 = arith.constant 2 : index
    %c0_28 = arith.constant 0 : index
    %c0_29 = arith.constant 0 : index
    %24 = vector.load %arg4[%c0_26, %c2_27, %c0_28, %c0_29] : memref<1x3x2x128xf32, #tpu.memory_space<vmem>>, vector<1x1x2x128xf32>
    %25 = vector.shape_cast %24 : vector<1x1x2x128xf32> to vector<2x128xf32>
    %26 = vector.shape_cast %23 : vector<2x128xf32> to vector<1x1x2x128xf32>
    tpu.vector_store %arg4[%c0_26, %c2_27, %c0_28, %c0_29], %26 {strides = array<i32>} : memref<1x3x2x128xf32, #tpu.memory_space<vmem>>, vector<1x1x2x128xf32>,
    return
  }
  func.func @transform_0(%arg0: i32, %arg1: i32) -> (i32, i32, i32) {
    %c1_i32 = arith.constant 1 : i32
    %0 = arith.muli %arg0, %c1_i32 : i32
    %1 = arith.addi %0, %arg1 : i32
    %c0_i32 = arith.constant 0 : i32
    %c0_i32_0 = arith.constant 0 : i32
    %c0_i32_1 = arith.constant 0 : i32
    return %c0_i32, %1, %c0_i32_0 : i32, i32, i32
  }
  func.func @transform_1(%arg0: i32, %arg1: i32) -> (i32, i32, i32) {
    %c1_i32 = arith.constant 1 : i32
    %0 = arith.muli %arg0, %c1_i32 : i32
    %1 = arith.addi %0, %arg1 : i32
    %c0_i32 = arith.constant 0 : i32
    %c0_i32_0 = arith.constant 0 : i32
    %c0_i32_1 = arith.constant 0 : i32
    return %c0_i32, %1, %c0_i32_0 : i32, i32, i32
  }
  func.func @transform_2(%arg0: i32, %arg1: i32) -> (i32, i32, i32, i32) {
    %c0_i32 = arith.constant 0 : i32
    %c0_i32_0 = arith.constant 0 : i32
    %c0_i32_1 = arith.constant 0 : i32
    %c0_i32_2 = arith.constant 0 : i32
    return %arg0, %c0_i32, %c0_i32_0, %c0_i32_1 : i32, i32, i32, i32
  }
}

</mosaic_0001>

<llo_original>
// kernel: tpu_custom_call.1
$region0: #{tpu_custom_call.1}
  #allocation0 [shape = 'u32[]', space=smem, size = 0x4, offset = 0x4, fixed_abs, tag = 'smem constant byte address 0x4 - core index']
  #allocation1 [shape = 'u32[144,128]{1,0:T(1,128)}', space=vmem, size = 0x12000, scoped, tag = 'internal scratch']
  %s0 = inlined_call_operand.hbm [shape: f32[2,8,128], index: 0, kind: input, shape index: {}]
  %s1 = inlined_call_operand.hbm [shape: f32[2,8,128], index: 1, kind: input, shape index: {}]
  %s2 = inlined_call_operand.hbm [shape: f32[1,3,2,128], index: 2, kind: output, shape index: {}]
  %s3 = sld [smem:[#allocation0]]
  $region30: #{tpu_custom_call.1} parent=0
    _
  %s5 = ssub.s32 1, %s3
  %s6 = scalar_select 0, %s5, %s3
  $region1: #{tpu_custom_call.1} parent=0
    #allocation2 [shape = 'u8[8192]{0}', space=vmem, size = 0x2000, scoped, tag = 'input window, operand 0, single buffered']
    #allocation3 [shape = 's32[1]{0}', space=sflag, size = 0x4, scoped, tag = 'scoped memory for tpu_custom_call.1']
    #allocation4 [shape = 's32[1]{0}', space=sflag, size = 0x4, scoped, tag = 'scoped memory for tpu_custom_call.1']
    #allocation5 [shape = 'u8[8192]{0}', space=vmem, size = 0x2000, scoped, tag = 'input window, operand 1, single buffered']
    #allocation6 [shape = 's32[1]{0}', space=sflag, size = 0x4, scoped, tag = 'scoped memory for tpu_custom_call.1']
    #allocation7 [shape = 'u8[3072]{0}', space=vmem, size = 0xc00, scoped, tag = 'output window, operand 0, single buffered']
    %7 = vsyncpa [#allocation3], 0
    %8 = vsyncpa [#allocation6], 0
    %9 = vsyncpa [#allocation4], 0
    // Predicated region
    $region2: #{tpu_custom_call.1} parent=1 // pred_check
      _
    $region3: #{tpu_custom_call.1} parent=1 // pred_check_branch
      %11 = sbr.rel (0) target = $region5
    $region4: #{tpu_custom_call.1} parent=1 // pred_region
      %s12 = sadd.s32 0, 0
      %s14 = ssub.s32 256, 256
      %15 = vsyncadd [#allocation3], %s14
      %s16 = smul.addr %s12, 128
      %s17 = scalar_lea.hbm %s0, %s16
      %s18 = sshll.u32 [#allocation2], 4
      %s19 = int_to_ptr.vmem [resolvable:$true] %s18
      %24 = dma.hbm_to_vmem [thread:$0]  %s17, 256, %s19, [#allocation3], 128, 128, 8
    $region5: #{tpu_custom_call.1} parent=1 // pred_fallthru
      _
    // Predicated region
    $region6: #{tpu_custom_call.1} parent=1 // pred_check
      _
    $region7: #{tpu_custom_call.1} parent=1 // pred_check_branch
      %26 = sbr.rel (0) target = $region9
    $region8: #{tpu_custom_call.1} parent=1 // pred_region
      %s27 = sadd.s32 0, 0
      %s29 = ssub.s32 256, 256
      %30 = vsyncadd [#allocation6], %s29
      %s31 = smul.addr %s27, 128
      %s32 = scalar_lea.hbm %s1, %s31
      %s33 = sshll.u32 [#allocation5], 4
      %s34 = int_to_ptr.vmem [resolvable:$true] %s33
      %39 = dma.hbm_to_vmem [thread:$0]  %s32, 256, %s34, [#allocation6], 128, 128, 8
    $region9: #{tpu_custom_call.1} parent=1 // pred_fallthru
      _
    // Predicated region
    $region10: #{tpu_custom_call.1} parent=1 // pred_check
      _
    $region11: #{tpu_custom_call.1} parent=1 // pred_check_branch
      %41 = sbr.rel (0) target = $region13
    $region12: #{tpu_custom_call.1} parent=1 // pred_region
      %42 = dma.done [#allocation3], 256
    $region13: #{tpu_custom_call.1} parent=1 // pred_fallthru
      _
    // Predicated region
    $region14: #{tpu_custom_call.1} parent=1 // pred_check
      _
    $region15: #{tpu_custom_call.1} parent=1 // pred_check_branch
      %44 = sbr.rel (0) target = $region17
    $region16: #{tpu_custom_call.1} parent=1 // pred_region
      %45 = dma.done [#allocation6], 256
    $region17: #{tpu_custom_call.1} parent=1 // pred_fallthru
      _
    %s46 = sadd.s32 0, 0
    %s47 = sadd.s32 0, 0
    %p48 = scmp.eq.s32.totalorder 0, 0
    // Predicated region
    $region18: #{tpu_custom_call.1} parent=1 // pred_check
      %p49 = pneg %p48
    $region19: #{tpu_custom_call.1} parent=1 // pred_check_branch
      %51 = sbr.rel (%p49) target = $region21
    $region20: #{tpu_custom_call.1} parent=1 // pred_region
      %52 = vst [vmem:[#allocation7] sm:$0x3] 0.0
      %53 = vst [vmem:[#allocation7 + $0x2] sm:$0x3] 0.0
      %54 = vst [vmem:[#allocation7 + $0x4] sm:$0x3] 0.0
    $region21: #{tpu_custom_call.1} parent=1 // pred_fallthru
      _
    %v55 = vld [vmem:[#allocation2] sm:$0xff]
    %v56 = vld [vmem:[#allocation2 + $0x8] sm:$0xff]
    %v57 = vld [vmem:[#allocation5] sm:$0xff]
    %v58 = vld [vmem:[#allocation5 + $0x8] sm:$0xff]
    %v59 = vld [vmem:[#allocation7] sm:$0x3]
    %v60 = vmul.f32 %v55, %v57
    %v61 = vmul.f32 %v56, %v58
    %v62 = vrot.slane %v60, 4
    %v63 = vadd.f32 %v60, %v62
    %v64 = vrot.slane %v63, 2
    %v65 = vadd.f32 %v63, %v64
    %v66 = vrot.slane %v65, 1
    %v67 = vadd.f32 %v65, %v66
    %v68 = vrot.slane %v61, 4
    %v69 = vadd.f32 %v61, %v68
    %v70 = vrot.slane %v69, 2
    %v71 = vadd.f32 %v69, %v70
    %v72 = vrot.slane %v71, 1
    %v73 = vadd.f32 %v71, %v72
    %vm76 = vcmask 1041409
    %v77 = vsel %vm76, %v73, %v67
    %v79 = vadd.f32 %v59, %v77
    %80 = vst [vmem:[#allocation7] sm:$0x3] %v79
    %s81 = scalar_lea.vmem [#allocation7], 2
    %v82 = vld [vmem:[%s81] sm:$0x3]
    %v83 = vrot.slane %v55, 4
    %v84 = vadd.f32 %v55, %v83
    %v85 = vrot.slane %v84, 2
    %v86 = vadd.f32 %v84, %v85
    %v87 = vrot.slane %v86, 1
    %v88 = vadd.f32 %v86, %v87
    %v89 = vrot.slane %v56, 4
    %v90 = vadd.f32 %v56, %v89
    %v91 = vrot.slane %v90, 2
    %v92 = vadd.f32 %v90, %v91
    %v93 = vrot.slane %v92, 1
    %v94 = vadd.f32 %v92, %v93
    %v97 = vsel %vm76, %v94, %v88
    %v99 = vadd.f32 %v82, %v97
    %100 = vst [vmem:[%s81] sm:$0x3] %v99
    %s101 = scalar_lea.vmem [#allocation7], 4
    %v102 = vld [vmem:[%s101] sm:$0x3]
    %v103 = vrot.slane %v57, 4
    %v104 = vadd.f32 %v57, %v103
    %v105 = vrot.slane %v104, 2
    %v106 = vadd.f32 %v104, %v105
    %v107 = vrot.slane %v106, 1
    %v108 = vadd.f32 %v106, %v107
    %v109 = vrot.slane %v58, 4
    %v110 = vadd.f32 %v58, %v109
    %v111 = vrot.slane %v110, 2
    %v112 = vadd.f32 %v110, %v111
    %v113 = vrot.slane %v112, 1
    %v114 = vadd.f32 %v112, %v113
    %v117 = vsel %vm76, %v114, %v108
    %v119 = vadd.f32 %v102, %v117
    %120 = vst [vmem:[%s101] sm:$0x3] %v119
    // Predicated region
    $region22: #{tpu_custom_call.1} parent=1 // pred_check
      _
    $region23: #{tpu_custom_call.1} parent=1 // pred_check_branch
      %122 = sbr.rel (0) target = $region25
    $region24: #{tpu_custom_call.1} parent=1 // pred_region
      %s124 = ssub.s32 96, 96
      %125 = vsyncadd [#allocation4], %s124
      %s126 = sshll.u32 [#allocation7], 4
      %s127 = int_to_ptr.vmem [resolvable:$true] %s126
      %132 = dma.vmem_to_hbm [thread:$0]  %s127, 96, %s2, [#allocation4], 32, 32, 2
    $region25: #{tpu_custom_call.1} parent=1 // pred_fallthru
      _
    // Predicated region
    $region26: #{tpu_custom_call.1} parent=1 // pred_check
      _
    $region27: #{tpu_custom_call.1} parent=1 // pred_check_branch
      %134 = sbr.rel (0) target = $region29
    $region28: #{tpu_custom_call.1} parent=1 // pred_region
      %135 = dma.done [#allocation4], 96
    $region29: #{tpu_custom_call.1} parent=1 // pred_fallthru
      _
    %136 = vsyncpa [#allocation3], 1
    %137 = vsyncpa [#allocation6], 1
    %138 = vsyncpa [#allocation4], 1

</llo_original>
